<compile_context>
chip_gen: v6e
topology: v6e:2x2x1
jax: 0.10.0
libtpu: 0.0.40
codegen_flags: <defaults>
</compile_context>

<pallas_src>
import functools

import jax
import jax.numpy as jnp
from jax.experimental import pallas as pl
from jax.experimental.pallas import tpu as pltpu


def _pick_q_tile(seq_len, target=256):
    """Largest query tile <= target that divides seq_len and is a multiple of 8.
    Falls back to the full sequence (always a legal block)."""
    if seq_len <= target:
        return seq_len
    t = (target // 8) * 8
    while t >= 8:
        if seq_len % t == 0:
            return t
        t -= 8
    return seq_len


# ---------------- stage 1: fused QKV projection (head-major output) ----------------
def _qkv_proj_kernel(x_ref, w_ref, q_ref, k_ref, v_ref, *, n_head, d_k):
    # x_ref: (1, TQ, M) f32 ; w_ref: (M, 3*H*D) compute dtype
    x = x_ref[0].astype(w_ref.dtype)
    qkv = jnp.dot(x, w_ref[...], preferred_element_type=jnp.float32)   # (TQ, 3*H*D)
    hd = n_head * d_k
    for h in range(n_head):                 # static loop, static lane slices
        q_ref[0, h] = qkv[:, h * d_k:(h + 1) * d_k].astype(q_ref.dtype)
        k_ref[0, h] = qkv[:, hd + h * d_k: hd + (h + 1) * d_k].astype(k_ref.dtype)
        v_ref[0, h] = qkv[:, 2 * hd + h * d_k: 2 * hd + (h + 1) * d_k].astype(v_ref.dtype)


# ------------- stage 2: shielded attention + fc + residual + LayerNorm -------------
def _attn_kernel(x_ref, rpe_ref, mask_ref, q_ref, k_ref, v_ref,
                 wo_ref, bo_ref, gamma_ref, beta_ref,
                 out_ref, ctx_heads_ref,
                 *, n_head, d_k, eps, approx_recip):
    h = pl.program_id(2)                    # head axis (reduction, innermost)
    scale = 1.0 / (d_k ** 0.5)

    q = q_ref[0, 0]                         # (TQ, D)  compute dtype
    k = k_ref[0, 0]                         # (S,  D)
    v = v_ref[0, 0]                         # (S,  D)
    mask = mask_ref[...]                    # (TQ, S)  f32

    # QKP_mm_tvm: QK^T + rpe, non-neighbours -> -1e9, then scale by 1/sqrt(d_k)
    s = jax.lax.dot_general(q, k, (((1,), (1,)), ((), ())),
                            preferred_element_type=jnp.float32)        # (TQ, S)
    s = s + rpe_ref[0, 0].astype(jnp.float32)
    s = jnp.where(mask > 0, s, -1e9) * scale

    # softmax over keys (f32)
    s = s - jnp.max(s, axis=-1, keepdims=True)
    e = jnp.exp(s)
    p = e * pl.reciprocal(jnp.sum(e, axis=-1, keepdims=True), approx=approx_recip)

    # AttnV_mm_tvm (padding=0): only graph neighbours contribute
    p = (p * mask).astype(q.dtype)
    ctx_heads_ref[h] = jnp.dot(p, v, preferred_element_type=jnp.float32
                               ).astype(ctx_heads_ref.dtype)            # (TQ, D)

    # last head for this (batch, query-tile): fuse heads -> single Wo matmul,
    # add bias + residual, LayerNorm, and emit the output block.
    @pl.when(h == n_head - 1)
    def _():
        attn = jnp.concatenate([ctx_heads_ref[i] for i in range(n_head)],
                               axis=-1)                                 # (TQ, H*D)
        ctx = jnp.dot(attn, wo_ref[...], preferred_element_type=jnp.float32)
        ctx = ctx + bo_ref[...] + x_ref[0]
        mean = jnp.mean(ctx, axis=-1, keepdims=True)
        var = jnp.mean((ctx - mean) ** 2, axis=-1, keepdims=True)
        normed = (ctx - mean) * jax.lax.rsqrt(var + eps)
        out_ref[0] = (normed * gamma_ref[...] + beta_ref[...]).astype(out_ref.dtype)


def shielded_attention_rpe(hidden_states, rpe, q_k_mask, params,
                           n_head, d_k, eps=1e-6,
                           compute_dtype=jnp.bfloat16,
                           q_tile=None,
                           vmem_limit_bytes=48 * 1024 * 1024):
    B, S, M = hidden_states.shape
    hd = n_head * d_k
    cdt = jnp.dtype(compute_dtype)
    approx_recip = cdt != jnp.dtype(jnp.float32)

    tq = q_tile if q_tile is not None else _pick_q_tile(S)
    assert S % tq == 0, (S, tq)
    n_qt = S // tq

    x = hidden_states.astype(jnp.float32)            # residual / LN kept in f32
    mask = q_k_mask.astype(jnp.float32)
    # head-major rpe: each (head, query-tile) slab becomes one contiguous DMA block
    # (layout plumbing; a real producer would emit rpe head-major + bf16 directly).
    rpe_t = jnp.transpose(rpe, (0, 2, 1, 3)).astype(cdt)            # (B, H, S, S)
    # fused QKV weight: one (M, 3*H*D) matmul instead of three
    wqkv = jnp.concatenate([params["wq"], params["wk"], params["wv"]],
                           axis=1).astype(cdt)                      # (M, 3*H*D)
    wo = params["wo"].astype(cdt)                                   # (H*D, M)
    bo = params["bo"].astype(jnp.float32)
    gamma = params["gamma"].astype(jnp.float32)
    beta = params["beta"].astype(jnp.float32)

    # ---- stage 1: fused QKV projection ----
    qkv_kernel = functools.partial(_qkv_proj_kernel, n_head=n_head, d_k=d_k)
    head_shape = jax.ShapeDtypeStruct((B, n_head, S, d_k), cdt)
    q, k, v = pl.pallas_call(
        qkv_kernel,
        out_shape=(head_shape, head_shape, head_shape),
        grid=(B, n_qt),
        in_specs=[
            pl.BlockSpec((1, tq, M), lambda b, i: (b, i, 0)),       # x tile
            pl.BlockSpec((M, 3 * hd), lambda b, i: (0, 0)),         # fused Wqkv
        ],
        out_specs=(
            pl.BlockSpec((1, n_head, tq, d_k), lambda b, i: (b, 0, i, 0)),
            pl.BlockSpec((1, n_head, tq, d_k), lambda b, i: (b, 0, i, 0)),
            pl.BlockSpec((1, n_head, tq, d_k), lambda b, i: (b, 0, i, 0)),
        ),
        compiler_params=pltpu.CompilerParams(
            dimension_semantics=("parallel", "parallel"),
            vmem_limit_bytes=vmem_limit_bytes),
    )(x, wqkv)

    # ---- stage 2: shielded attention + output projection + residual + LayerNorm ----
    attn_kernel = functools.partial(_attn_kernel, n_head=n_head, d_k=d_k,
                                    eps=eps, approx_recip=approx_recip)
    return pl.pallas_call(
        attn_kernel,
        out_shape=jax.ShapeDtypeStruct((B, S, M), jnp.float32),
        grid=(B, n_qt, n_head),                     # head axis last (reduction)
        in_specs=[
            pl.BlockSpec((1, tq, M), lambda b, i, h: (b, i, 0)),          # x / residual
            pl.BlockSpec((1, 1, tq, S), lambda b, i, h: (b, h, i, 0)),    # rpe (head-major)
            pl.BlockSpec((tq, S), lambda b, i, h: (i, 0)),                # q_k_mask
            pl.BlockSpec((1, 1, tq, d_k), lambda b, i, h: (b, h, i, 0)),  # Q tile
            pl.BlockSpec((1, 1, S, d_k), lambda b, i, h: (b, h, 0, 0)),   # K (full keys)
            pl.BlockSpec((1, 1, S, d_k), lambda b, i, h: (b, h, 0, 0)),   # V (full keys)
            pl.BlockSpec((hd, M), lambda b, i, h: (0, 0)),                # Wo (fc)
            pl.BlockSpec((1, M), lambda b, i, h: (0, 0)),                 # fc bias
            pl.BlockSpec((1, M), lambda b, i, h: (0, 0)),                 # LN gamma
            pl.BlockSpec((1, M), lambda b, i, h: (0, 0)),                 # LN beta
        ],
        out_specs=pl.BlockSpec((1, tq, M), lambda b, i, h: (b, i, 0)),
        scratch_shapes=[pltpu.VMEM((n_head, tq, d_k), cdt)],              # per-head outputs
        compiler_params=pltpu.CompilerParams(
            dimension_semantics=("parallel", "parallel", "arbitrary"),
            vmem_limit_bytes=vmem_limit_bytes),
    )(x, rpe_t, mask, q, k, v, wo, bo, gamma, beta)


# ---------------- pure-JAX reference (same math, all f32) ----------------
def reference(hidden_states, rpe, q_k_mask, params, n_head, d_k, eps=1e-6):
    B, S, M = hidden_states.shape
    x = hidden_states
    q = (x @ params["wq"]).reshape(B, S, n_head, d_k)
    k = (x @ params["wk"]).reshape(B, S, n_head, d_k)
    v = (x @ params["wv"]).reshape(B, S, n_head, d_k)
    s = jnp.einsum("bihd,bjhd->bihj", q, k) + rpe
    mask = q_k_mask[None, :, None, :]
    s = jnp.where(mask > 0, s, -1e9) / (d_k ** 0.5)
    p = jax.nn.softmax(s, axis=-1) * mask
    attn = jnp.einsum("bihj,bjhd->bihd", p, v).reshape(B, S, n_head * d_k)
    ctx = attn @ params["wo"] + params["bo"][0] + x
    mean = jnp.mean(ctx, axis=-1, keepdims=True)
    var = jnp.mean((ctx - mean) ** 2, axis=-1, keepdims=True)
    return (ctx - mean) * jax.lax.rsqrt(var + eps) * params["gamma"][0] \
        + params["beta"][0]


def generate_attn_mask(seq_len, station_num):
    m = jnp.zeros((seq_len, seq_len), jnp.float32)
    m = m.at[:, :station_num].set(1.0)
    return jnp.maximum(m, jnp.eye(seq_len, dtype=jnp.float32))


if __name__ == "__main__":
    # small config consistent with the module's opt
    B, S, M = 2, 16, 32
    n_head, d_k = 2, 16
    station_num = 4

    key = jax.random.PRNGKey(0)
    ks = jax.random.split(key, 8)
    hidden_states = jax.random.normal(ks[0], (B, S, M), jnp.float32)
    rpe = 0.1 * jax.random.normal(ks[1], (B, S, n_head, S), jnp.float32)

    params = {
        "wq": 0.1 * jax.random.normal(ks[2], (M, n_head * d_k), jnp.float32),
        "wk": 0.1 * jax.random.normal(ks[3], (M, n_head * d_k), jnp.float32),
        "wv": 0.1 * jax.random.normal(ks[4], (M, n_head * d_k), jnp.float32),
        "wo": 0.1 * jax.random.normal(ks[5], (n_head * d_k, M), jnp.float32),
        "bo": 0.1 * jax.random.normal(ks[6], (1, M), jnp.float32),
        "gamma": jnp.ones((1, M), jnp.float32),    # LayerNorm default init
        "beta": jnp.zeros((1, M), jnp.float32),
    }
    q_k_mask = generate_attn_mask(S, station_num)

    ref = reference(hidden_states, rpe, q_k_mask, params, n_head, d_k)

    # precise path (f32 everywhere, exact reciprocal): tight check
    out_f32 = shielded_attention_rpe(hidden_states, rpe, q_k_mask, params,
                                     n_head, d_k, compute_dtype=jnp.float32)
    out_f32 = jax.block_until_ready(out_f32)
    assert out_f32.shape == (B, S, M)
    err_f32 = float(jnp.max(jnp.abs(out_f32 - ref)))
    assert jnp.allclose(out_f32, ref, atol=1e-4, rtol=1e-4), err_f32

    # fast path (bf16 MXU operands, bf16 rpe stream, approx reciprocal)
    out_bf16 = shielded_attention_rpe(hidden_states, rpe, q_k_mask, params,
                                      n_head, d_k, compute_dtype=jnp.bfloat16)
    out_bf16 = jax.block_until_ready(out_bf16)
    assert out_bf16.shape == (B, S, M)
    err_bf16 = float(jnp.max(jnp.abs(out_bf16 - ref)))
    assert jnp.allclose(out_bf16, ref, atol=3e-2, rtol=3e-2), err_bf16

    print("KERNEL_OK")
</pallas_src>

<mosaic_0001>
module attributes {stable_mosaic.version = 11 : i64} {
  func.func @_qkv_proj_kernel(%arg0: i32, %arg1: i32, %arg2: memref<1x16x32xf32, #tpu.memory_space<vmem>>, %arg3: memref<32x96xf32, #tpu.memory_space<vmem>>, %arg4: memref<1x2x16x16xf32, #tpu.memory_space<vmem>>, %arg5: memref<1x2x16x16xf32, #tpu.memory_space<vmem>>, %arg6: memref<1x2x16x16xf32, #tpu.memory_space<vmem>>) attributes {dimension_semantics = [#tpu.dimension_semantics<parallel>, #tpu.dimension_semantics<parallel>], iteration_bounds = array<i64: 2, 1>, scalar_prefetch = 0 : i64, scratch_operands = 0 : i64, tpu.core_type = #tpu.core_type<tc>, window_params = [{transform_indices = @transform_0, window_bounds = array<i64: 1, 16, 32>}, {pipeline_mode = #tpu.pipeline_mode<synchronous>, transform_indices = @transform_1, window_bounds = array<i64: 32, 96>}, {transform_indices = @transform_2, window_bounds = array<i64: 1, 2, 16, 16>}, {transform_indices = @transform_3, window_bounds = array<i64: 1, 2, 16, 16>}, {transform_indices = @transform_4, window_bounds = array<i64: 1, 2, 16, 16>}]} {
    %c0 = arith.constant 0 : index
    %c0_0 = arith.constant 0 : index
    %c0_1 = arith.constant 0 : index
    %0 = vector.load %arg2[%c0, %c0_0, %c0_1] : memref<1x16x32xf32, #tpu.memory_space<vmem>>, vector<1x16x32xf32>
    %1 = vector.shape_cast %0 : vector<1x16x32xf32> to vector<16x32xf32>
    %c0_2 = arith.constant 0 : index
    %c0_3 = arith.constant 0 : index
    %2 = vector.load %arg3[%c0_2, %c0_3] : memref<32x96xf32, #tpu.memory_space<vmem>>, vector<32x96xf32>
    %cst = arith.constant dense<0.000000e+00> : vector<16x96xf32>
    %3 = tpu.matmul %1, %2, %cst {dimension_numbers = #tpu.dot_dimension_numbers<[1], [0], [0], [1], [0, 0, 1, 1], [], []>} : vector<16x32xf32>, vector<32x96xf32>, vector<16x96xf32> -> vector<16x96xf32>
    %4 = vector.extract_strided_slice %3 {offsets = [0, 0], sizes = [16, 16], strides = [1, 1]} : vector<16x96xf32> to vector<16x16xf32>
    %c0_4 = arith.constant 0 : index
    %c0_5 = arith.constant 0 : index
    %c0_6 = arith.constant 0 : index
    %c0_7 = arith.constant 0 : index
    %5 = vector.load %arg4[%c0_4, %c0_5, %c0_6, %c0_7] : memref<1x2x16x16xf32, #tpu.memory_space<vmem>>, vector<1x1x16x16xf32>
    %6 = vector.shape_cast %5 : vector<1x1x16x16xf32> to vector<16x16xf32>
    %7 = vector.shape_cast %4 : vector<16x16xf32> to vector<1x1x16x16xf32>
    tpu.vector_store %arg4[%c0_4, %c0_5, %c0_6, %c0_7], %7 {strides = array<i32>} : memref<1x2x16x16xf32, #tpu.memory_space<vmem>>, vector<1x1x16x16xf32>,
    %8 = vector.extract_strided_slice %3 {offsets = [0, 32], sizes = [16, 16], strides = [1, 1]} : vector<16x96xf32> to vector<16x16xf32>
    %c0_8 = arith.constant 0 : index
    %c0_9 = arith.constant 0 : index
    %c0_10 = arith.constant 0 : index
    %c0_11 = arith.constant 0 : index
    %9 = vector.load %arg5[%c0_8, %c0_9, %c0_10, %c0_11] : memref<1x2x16x16xf32, #tpu.memory_space<vmem>>, vector<1x1x16x16xf32>
    %10 = vector.shape_cast %9 : vector<1x1x16x16xf32> to vector<16x16xf32>
    %11 = vector.shape_cast %8 : vector<16x16xf32> to vector<1x1x16x16xf32>
    tpu.vector_store %arg5[%c0_8, %c0_9, %c0_10, %c0_11], %11 {strides = array<i32>} : memref<1x2x16x16xf32, #tpu.memory_space<vmem>>, vector<1x1x16x16xf32>,
    %12 = vector.extract_strided_slice %3 {offsets = [0, 64], sizes = [16, 16], strides = [1, 1]} : vector<16x96xf32> to vector<16x16xf32>
    %c0_12 = arith.constant 0 : index
    %c0_13 = arith.constant 0 : index
    %c0_14 = arith.constant 0 : index
    %c0_15 = arith.constant 0 : index
    %13 = vector.load %arg6[%c0_12, %c0_13, %c0_14, %c0_15] : memref<1x2x16x16xf32, #tpu.memory_space<vmem>>, vector<1x1x16x16xf32>
    %14 = vector.shape_cast %13 : vector<1x1x16x16xf32> to vector<16x16xf32>
    %15 = vector.shape_cast %12 : vector<16x16xf32> to vector<1x1x16x16xf32>
    tpu.vector_store %arg6[%c0_12, %c0_13, %c0_14, %c0_15], %15 {strides = array<i32>} : memref<1x2x16x16xf32, #tpu.memory_space<vmem>>, vector<1x1x16x16xf32>,
    %16 = vector.extract_strided_slice %3 {offsets = [0, 16], sizes = [16, 16], strides = [1, 1]} : vector<16x96xf32> to vector<16x16xf32>
    %c0_16 = arith.constant 0 : index
    %c1 = arith.constant 1 : index
    %c0_17 = arith.constant 0 : index
    %c0_18 = arith.constant 0 : index
    %17 = vector.load %arg4[%c0_16, %c1, %c0_17, %c0_18] : memref<1x2x16x16xf32, #tpu.memory_space<vmem>>, vector<1x1x16x16xf32>
    %18 = vector.shape_cast %17 : vector<1x1x16x16xf32> to vector<16x16xf32>
    %19 = vector.shape_cast %16 : vector<16x16xf32> to vector<1x1x16x16xf32>
    tpu.vector_store %arg4[%c0_16, %c1, %c0_17, %c0_18], %19 {strides = array<i32>} : memref<1x2x16x16xf32, #tpu.memory_space<vmem>>, vector<1x1x16x16xf32>,
    %20 = vector.extract_strided_slice %3 {offsets = [0, 48], sizes = [16, 16], strides = [1, 1]} : vector<16x96xf32> to vector<16x16xf32>
    %c0_19 = arith.constant 0 : index
    %c1_20 = arith.constant 1 : index
    %c0_21 = arith.constant 0 : index
    %c0_22 = arith.constant 0 : index
    %21 = vector.load %arg5[%c0_19, %c1_20, %c0_21, %c0_22] : memref<1x2x16x16xf32, #tpu.memory_space<vmem>>, vector<1x1x16x16xf32>
    %22 = vector.shape_cast %21 : vector<1x1x16x16xf32> to vector<16x16xf32>
    %23 = vector.shape_cast %20 : vector<16x16xf32> to vector<1x1x16x16xf32>
    tpu.vector_store %arg5[%c0_19, %c1_20, %c0_21, %c0_22], %23 {strides = array<i32>} : memref<1x2x16x16xf32, #tpu.memory_space<vmem>>, vector<1x1x16x16xf32>,
    %24 = vector.extract_strided_slice %3 {offsets = [0, 80], sizes = [16, 16], strides = [1, 1]} : vector<16x96xf32> to vector<16x16xf32>
    %c0_23 = arith.constant 0 : index
    %c1_24 = arith.constant 1 : index
    %c0_25 = arith.constant 0 : index
    %c0_26 = arith.constant 0 : index
    %25 = vector.load %arg6[%c0_23, %c1_24, %c0_25, %c0_26] : memref<1x2x16x16xf32, #tpu.memory_space<vmem>>, vector<1x1x16x16xf32>
    %26 = vector.shape_cast %25 : vector<1x1x16x16xf32> to vector<16x16xf32>
    %27 = vector.shape_cast %24 : vector<16x16xf32> to vector<1x1x16x16xf32>
    tpu.vector_store %arg6[%c0_23, %c1_24, %c0_25, %c0_26], %27 {strides = array<i32>} : memref<1x2x16x16xf32, #tpu.memory_space<vmem>>, vector<1x1x16x16xf32>,
    return
  }
  func.func @transform_0(%arg0: i32, %arg1: i32) -> (i32, i32, i32) {
    %c0_i32 = arith.constant 0 : i32
    %c0_i32_0 = arith.constant 0 : i32
    return %arg0, %arg1, %c0_i32 : i32, i32, i32
  }
  func.func @transform_1(%arg0: i32, %arg1: i32) -> (i32, i32) {
    %c0_i32 = arith.constant 0 : i32
    %c0_i32_0 = arith.constant 0 : i32
    %c0_i32_1 = arith.constant 0 : i32
    return %c0_i32, %c0_i32_0 : i32, i32
  }
  func.func @transform_2(%arg0: i32, %arg1: i32) -> (i32, i32, i32, i32) {
    %c0_i32 = arith.constant 0 : i32
    %c0_i32_0 = arith.constant 0 : i32
    %c0_i32_1 = arith.constant 0 : i32
    return %arg0, %c0_i32, %arg1, %c0_i32_0 : i32, i32, i32, i32
  }
  func.func @transform_3(%arg0: i32, %arg1: i32) -> (i32, i32, i32, i32) {
    %c0_i32 = arith.constant 0 : i32
    %c0_i32_0 = arith.constant 0 : i32
    %c0_i32_1 = arith.constant 0 : i32
    return %arg0, %c0_i32, %arg1, %c0_i32_0 : i32, i32, i32, i32
  }
  func.func @transform_4(%arg0: i32, %arg1: i32) -> (i32, i32, i32, i32) {
    %c0_i32 = arith.constant 0 : i32
    %c0_i32_0 = arith.constant 0 : i32
    %c0_i32_1 = arith.constant 0 : i32
    return %arg0, %c0_i32, %arg1, %c0_i32_0 : i32, i32, i32, i32
  }
}

</mosaic_0001>

<llo_original>
// kernel: tpu_custom_call.1
$region0: #{tpu_custom_call.1}
  #allocation0 [shape = 'u32[]', space=smem, size = 0x4, offset = 0x4, fixed_abs, tag = 'smem constant byte address 0x4 - core index']
  #allocation1 [shape = 'u32[144,128]{1,0:T(1,128)}', space=vmem, size = 0x12000, scoped, tag = 'internal scratch']
  %s0 = inlined_call_operand.hbm [shape: f32[2,16,32], index: 0, kind: input, shape index: {}]
  %s1 = inlined_call_operand.hbm [shape: f32[32,96], index: 1, kind: input, shape index: {}]
  %s2 = inlined_call_operand.hbm [shape: f32[2,2,16,16], index: 2, kind: output, shape index: {0}]
  %s3 = inlined_call_operand.hbm [shape: f32[2,2,16,16], index: 3, kind: output, shape index: {1}]
  %s4 = inlined_call_operand.hbm [shape: f32[2,2,16,16], index: 4, kind: output, shape index: {2}]
  %5 = xla_tuple %s2, %s3, %s4
  %s6 = sld [smem:[#allocation0]]
  $region65: #{tpu_custom_call.1} parent=0
    _
  %s8 = ssub.s32 1, %s6
  %s9 = scalar_select 0, %s8, %s6
  $region1: #{tpu_custom_call.1} parent=0
    #allocation2 [shape = 'u8[16384]{0}', space=vmem, size = 0x4000, scoped, tag = 'input window, operand 0']
    #allocation3 [shape = 's32[2]{0}', space=sflag, size = 0x8, scoped, tag = 'scoped memory for tpu_custom_call.1']
    #allocation4 [shape = 's32[2]{0}', space=sflag, size = 0x8, scoped, tag = 'scoped memory for tpu_custom_call.1']
    #allocation5 [shape = 'u8[16384]{0}', space=vmem, size = 0x4000, scoped, tag = 'input window, operand 1, single buffered']
    #allocation6 [shape = 's32[1]{0}', space=sflag, size = 0x4, scoped, tag = 'scoped memory for tpu_custom_call.1']
    #allocation7 [shape = 'u8[32768]{0}', space=vmem, size = 0x8000, scoped, tag = 'output window, operand 0']
    #allocation8 [shape = 'u8[32768]{0}', space=vmem, size = 0x8000, scoped, tag = 'output window, operand 1']
    #allocation9 [shape = 's32[2]{0}', space=sflag, size = 0x8, scoped, tag = 'scoped memory for tpu_custom_call.1']
    #allocation10 [shape = 'u8[32768]{0}', space=vmem, size = 0x8000, scoped, tag = 'output window, operand 2']
    %10 = vsyncpa [#allocation3], 0
    %s11 = scalar_lea.sflag [#allocation3], 1
    %12 = vsyncpa %s11, 0
    %13 = vsyncpa [#allocation6], 0
    %14 = vsyncpa [#allocation4], 0
    %s15 = scalar_lea.sflag [#allocation4], 1
    %16 = vsyncpa %s15, 0
    %17 = vsyncpa [#allocation9], 0
    %s18 = scalar_lea.sflag [#allocation9], 1
    %19 = vsyncpa %s18, 0
    loop: start=0, step=1, limit=4
    $region2: #{tpu_custom_call.1} parent=1 // loop_pre_header
      _
    $region3: #{tpu_custom_call.1} parent=1 // loop_header
      %s21 = sphi 0, %s25
      %p22 = scmp.ge.s32.totalorder %s21, 4
      %s28 = sphi 0, %s40
      %s29 = sphi 0, %s36
      %s30 = sphi 0, %s28
      %s31 = sphi 0, %s29
      %s32 = sphi 0, %s30
      %s33 = sphi 0, %s31
      %s45 = sphi 0, %s47
      %s48 = sphi 0, %s45
      %s49 = sphi 0, %s48
      %s65 = sphi 0, %s49
      %s69 = sphi 0, %s69
      %s71 = sphi 0, %s69
      %s72 = sphi 0, %s71
      %s86 = sphi 0, %s72
      %s94 = sphi 0, %s96
      %s97 = sphi 0, %s94
      %s98 = sphi 0, %s97
      %s114 = sphi 0, %s98
      %s122 = sphi 0, %s124
      %s125 = sphi 0, %s122
      %s126 = sphi 0, %s125
      %s142 = sphi 0, %s126
      %s150 = sphi 0, %s152
      %s153 = sphi 0, %s150
      %s154 = sphi 0, %s153
      %s170 = sphi 0, %s154
    $region4: #{tpu_custom_call.1} parent=1 // loop_header_branch
      %24 = sbr.rel (%p22) target = $region8
    $region5: #{tpu_custom_call.1} parent=1 // loop_body
      %s26 = ssub.s32 %s21, 1
      %s27 = ssub.s32 %s21, 2
      %s34 = sadd.s32 1, %s29
      %p35 = scmp.ge.s32.totalorder %s34, 1
      %s36 = scalar_select %p35, 0, %s34
      %s37 = sadd.s32 1, %s28
      %s38 = scalar_select %p35, %s37, %s28
      %p39 = scmp.ge.s32.totalorder %s38, 2
      %s40 = scalar_select %p39, 0, %s38
      %s41 = ssub.s32 %s28, %s40
      %s42 = ssub.s32 %s29, %s36
      %s43 = sor.u32 %s41, %s42
      %p44 = scmp.eq.s32.totalorder %s43, 0
      %s46 = sadd.s32 %s45, 1
      %s47 = scalar_select %p44, %s45, %s46
      %p50 = pneg %p44
      %p51 = scmp.eq.s32.totalorder %s21, 1
      %p52 = por %p50, %p51
      %p53 = scmp.ne.s32.totalorder %s45, %s48
      %p54 = scmp.eq.s32.totalorder %s21, 0
      %p55 = por %p53, %p54
      %p56 = scmp.ne.s32.totalorder %s45, %s48
      %p57 = scmp.eq.s32.totalorder %s26, 1
      %p58 = por %p56, %p57
      %p59 = scmp.ne.s32.totalorder %s48, %s49
      %p60 = scmp.eq.s32.totalorder %s26, 0
      %p61 = por %p59, %p60
      %p62 = scmp.ne.s32.totalorder %s48, %s49
      %p63 = scmp.eq.s32.totalorder %s27, 1
      %p64 = por %p62, %p63
      %p66 = scmp.ne.s32.totalorder %s49, %s65
      %p67 = scmp.eq.s32.totalorder %s27, 0
      %p68 = por %p66, %p67
      %s70 = sadd.s32 %s69, 1
      %p73 = scmp.eq.s32.totalorder %s21, 1
      %p74 = scmp.ne.s32.totalorder %s69, %s71
      %p75 = scmp.eq.s32.totalorder %s21, 0
      %p76 = por %p74, %p75
      %p77 = scmp.ne.s32.totalorder %s69, %s71
      %p78 = scmp.eq.s32.totalorder %s26, 1
      %p79 = por %p77, %p78
      %p80 = scmp.ne.s32.totalorder %s71, %s72
      %p81 = scmp.eq.s32.totalorder %s26, 0
      %p82 = por %p80, %p81
      %p83 = scmp.ne.s32.totalorder %s71, %s72
      %p84 = scmp.eq.s32.totalorder %s27, 1
      %p85 = por %p83, %p84
      %p87 = scmp.ne.s32.totalorder %s72, %s86
      %p88 = scmp.eq.s32.totalorder %s27, 0
      %p89 = por %p87, %p88
      %s90 = ssub.s32 %s28, %s40
      %s91 = ssub.s32 %s29, %s36
      %s92 = sor.u32 %s90, %s91
      %p93 = scmp.eq.s32.totalorder %s92, 0
      %s95 = sadd.s32 %s94, 1
      %s96 = scalar_select %p93, %s94, %s95
      %p99 = pneg %p93
      %p100 = scmp.eq.s32.totalorder %s21, 1
      %p101 = por %p99, %p100
      %p102 = scmp.ne.s32.totalorder %s94, %s97
      %p103 = scmp.eq.s32.totalorder %s21, 0
      %p104 = por %p102, %p103
      %p105 = scmp.ne.s32.totalorder %s94, %s97
      %p106 = scmp.eq.s32.totalorder %s26, 1
      %p107 = por %p105, %p106
      %p108 = scmp.ne.s32.totalorder %s97, %s98
      %p109 = scmp.eq.s32.totalorder %s26, 0
      %p110 = por %p108, %p109
      %p111 = scmp.ne.s32.totalorder %s97, %s98
      %p112 = scmp.eq.s32.totalorder %s27, 1
      %p113 = por %p111, %p112
      %p115 = scmp.ne.s32.totalorder %s98, %s114
      %p116 = scmp.eq.s32.totalorder %s27, 0
      %p117 = por %p115, %p116
      %s118 = ssub.s32 %s28, %s40
      %s119 = ssub.s32 %s29, %s36
      %s120 = sor.u32 %s118, %s119
      %p121 = scmp.eq.s32.totalorder %s120, 0
      %s123 = sadd.s32 %s122, 1
      %s124 = scalar_select %p121, %s122, %s123
      %p127 = pneg %p121
      %p128 = scmp.eq.s32.totalorder %s21, 1
      %p129 = por %p127, %p128
      %p130 = scmp.ne.s32.totalorder %s122, %s125
      %p131 = scmp.eq.s32.totalorder %s21, 0
      %p132 = por %p130, %p131
      %p133 = scmp.ne.s32.totalorder %s122, %s125
      %p134 = scmp.eq.s32.totalorder %s26, 1
      %p135 = por %p133, %p134
      %p136 = scmp.ne.s32.totalorder %s125, %s126
      %p137 = scmp.eq.s32.totalorder %s26, 0
      %p138 = por %p136, %p137
      %p139 = scmp.ne.s32.totalorder %s125, %s126
      %p140 = scmp.eq.s32.totalorder %s27, 1
      %p141 = por %p139, %p140
      %p143 = scmp.ne.s32.totalorder %s126, %s142
      %p144 = scmp.eq.s32.totalorder %s27, 0
      %p145 = por %p143, %p144
      %s146 = ssub.s32 %s28, %s40
      %s147 = ssub.s32 %s29, %s36
      %s148 = sor.u32 %s146, %s147
      %p149 = scmp.eq.s32.totalorder %s148, 0
      %s151 = sadd.s32 %s150, 1
      %s152 = scalar_select %p149, %s150, %s151
      %p155 = pneg %p149
      %p156 = scmp.eq.s32.totalorder %s21, 1
      %p157 = por %p155, %p156
      %p158 = scmp.ne.s32.totalorder %s150, %s153
      %p159 = scmp.eq.s32.totalorder %s21, 0
      %p160 = por %p158, %p159
      %p161 = scmp.ne.s32.totalorder %s150, %s153
      %p162 = scmp.eq.s32.totalorder %s26, 1
      %p163 = por %p161, %p162
      %p164 = scmp.ne.s32.totalorder %s153, %s154
      %p165 = scmp.eq.s32.totalorder %s26, 0
      %p166 = por %p164, %p165
      %p167 = scmp.ne.s32.totalorder %s153, %s154
      %p168 = scmp.eq.s32.totalorder %s27, 1
      %p169 = por %p167, %p168
      %p171 = scmp.ne.s32.totalorder %s154, %s170
      %p172 = scmp.eq.s32.totalorder %s27, 0
      %p173 = por %p171, %p172
      %p174 = scmp.le.s32.totalorder 1, %s21
      %p175 = scmp.lt.s32.totalorder %s21, 3
      %p176 = pnand %p174, %p175
      %p177 = pneg %p176
      // Predicated region
      $region9: #{tpu_custom_call.1} parent=5 // pred_check
        _
      $region10: #{tpu_custom_call.1} parent=5 // pred_check_branch
        %179 = sbr.rel (%p176) target = $region12
      $region11: #{tpu_custom_call.1} parent=5 // pred_region
        %s180 = ssub.s32 %s21, 1
        // Predicated region
        $region13: #{tpu_custom_call.1} parent=11 // pred_check
          %p181 = pneg %p82
        $region14: #{tpu_custom_call.1} parent=11 // pred_check_branch
          %183 = sbr.rel (%p181) target = $region16
        $region15: #{tpu_custom_call.1} parent=11 // pred_region
          %s185 = ssub.s32 512, 512
          %186 = vsyncadd [#allocation6], %s185
          %s187 = sshll.u32 [#allocation5], 4
          %s188 = int_to_ptr.vmem [resolvable:$true] %s187
          %193 = dma.hbm_to_vmem [thread:$0]  %s1, 512, %s188, [#allocation6], 128, 128, 8
        $region16: #{tpu_custom_call.1} parent=11 // pred_fallthru
          _
      $region12: #{tpu_custom_call.1} parent=5 // pred_fallthru
        _
      %p194 = scmp.lt.s32.totalorder %s21, 2
      // Predicated region
      $region17: #{tpu_custom_call.1} parent=5 // pred_check
        %p195 = pneg %p194
      $region18: #{tpu_custom_call.1} parent=5 // pred_check_branch
        %197 = sbr.rel (%p195) target = $region20
      $region19: #{tpu_custom_call.1} parent=5 // pred_region
        // Predicated region
        $region21: #{tpu_custom_call.1} parent=19 // pred_check
          %p198 = pneg %p55
        $region22: #{tpu_custom_call.1} parent=19 // pred_check_branch
          %200 = sbr.rel (%p198) target = $region24
        $region23: #{tpu_custom_call.1} parent=19 // pred_region
          %s201 = sand.u32 %s45, 1
          %s202 = scalar_lea.sflag [#allocation3], %s201
          %s203 = sand.u32 %s45, 1
          %s204 = smul.addr %s203, 16
          %s205 = scalar_lea.vmem [#allocation2], %s204
          %s206 = smul.u32 2, %s29
          %s208 = ssub.s32 256, 256
          %209 = vsyncadd %s202, %s208
          %s210 = smul.addr %s28, 2
          %s211 = sadd.s32 %s206, %s210
          %s212 = smul.addr %s211, 128
          %s213 = scalar_lea.hbm %s0, %s212
          %s214 = sshll.u32 %s205, 4
          %s215 = int_to_ptr.vmem [resolvable:$true] %s214
          %220 = dma.hbm_to_vmem [thread:$0]  %s213, 256, %s215, %s202, 128, 128, 8
        $region24: #{tpu_custom_call.1} parent=19 // pred_fallthru
          _
      $region20: #{tpu_custom_call.1} parent=5 // pred_fallthru
        _
      %p221 = scmp.le.s32.totalorder 1, %s21
      %p222 = scmp.lt.s32.totalorder %s21, 3
      %p223 = pnand %p221, %p222
      %p224 = pneg %p223
      // Predicated region
      $region25: #{tpu_custom_call.1} parent=5 // pred_check
        _
      $region26: #{tpu_custom_call.1} parent=5 // pred_check_branch
        %226 = sbr.rel (%p223) target = $region28
      $region27: #{tpu_custom_call.1} parent=5 // pred_region
        %s227 = ssub.s32 %s21, 1
        %s228 = sand.u32 %s48, 1
        %s229 = scalar_lea.sflag [#allocation3], %s228
        %s230 = sand.u32 %s48, 1
        %s231 = smul.addr %s230, 16
        %s232 = scalar_lea.vmem [#allocation2], %s231
        // Predicated region
        $region29: #{tpu_custom_call.1} parent=27 // pred_check
          %p233 = pneg %p61
        $region30: #{tpu_custom_call.1} parent=27 // pred_check_branch
          %235 = sbr.rel (%p233) target = $region32
        $region31: #{tpu_custom_call.1} parent=27 // pred_region
          %236 = dma.done %s229, 256
        $region32: #{tpu_custom_call.1} parent=27 // pred_fallthru
          _
        // Predicated region
        $region33: #{tpu_custom_call.1} parent=27 // pred_check
          %p237 = pneg %p82
        $region34: #{tpu_custom_call.1} parent=27 // pred_check_branch
          %239 = sbr.rel (%p237) target = $region36
        $region35: #{tpu_custom_call.1} parent=27 // pred_region
          %240 = dma.done [#allocation6], 512
        $region36: #{tpu_custom_call.1} parent=27 // pred_fallthru
          _
        %s241 = sand.u32 %s48, 1
        %s242 = scalar_lea.sflag [#allocation3], %s241
        %s243 = sand.u32 %s48, 1
        %s244 = smul.addr %s243, 16
        %s245 = scalar_lea.vmem [#allocation2], %s244
        %p246 = pneg %p61
        %p247 = pneg %p58
        %p248 = pneg %p82
        %p249 = pneg %p79
        %p250 = pneg %p110
        %p251 = pneg %p107
        %s252 = sand.u32 %s97, 1
        %s253 = scalar_lea.sflag [#allocation4], %s252
        %s254 = sand.u32 %s97, 1
        %s255 = smul.addr %s254, 32
        %s256 = scalar_lea.vmem [#allocation7], %s255
        %p257 = pneg %p138
        %p258 = pneg %p135
        %s259 = sand.u32 %s26, 1
        %s260 = scalar_lea.sflag [#allocation9], %s259
        %s261 = sand.u32 %s125, 1
        %s262 = smul.addr %s261, 32
        %s263 = scalar_lea.vmem [#allocation8], %s262
        %p264 = pneg %p166
        %p265 = pneg %p163
        %s266 = sand.u32 %s26, 1
        %s267 = scalar_lea.sflag [#allocation9], %s266
        %s268 = sand.u32 %s153, 1
        %s269 = smul.addr %s268, 32
        %s270 = scalar_lea.vmem [#allocation10], %s269
        %s271 = smul.u32 2, %s31
        %s272 = smul.u32 2, %s31
        %s273 = smul.u32 2, %s31
        %s274 = smul.u32 2, %s31
        %v275 = vld [vmem:[%s232] sm:$0xff]
        %v276 = vld [vmem:[%s232 + $0x8] sm:$0xff]
        %v277 = vld [vmem:[#allocation5] sm:$0xff]
        %v278 = vld [vmem:[#allocation5 + $0x8] sm:$0xff]
        %v279 = vld [vmem:[#allocation5 + $0x10] sm:$0xff]
        %v280 = vld [vmem:[#allocation5 + $0x18] sm:$0xff]
        %vm281 = vcmask 261120
        %v283 = vsel %vm281, %v275, 0
        %v286 = vsel %vm281, %v276, 0
        %288 = vmatprep.subr.mxu0 0.0
        %289 = vmatpush1.msra.mxu0 0.0
        %290 = vmatprep.subr.mxu0 0.0
        %291 = vmatpush1.msra.mxu0 0.0
        %292 = vmatprep.subr.mxu0 0.0
        %293 = vmatpush1.msra.mxu0 0.0
        %294 = vmatprep.subr.mxu0 0.0
        %295 = vmatpush1.msra.mxu0 0.0
        %296 = vmatprep.subr.mxu0 0.0
        %297 = vmatpush1.msra.mxu0 0.0
        %298 = vmatprep.subr.mxu0 0.0
        %299 = vmatpush1.msra.mxu0 0.0
        %300 = vmatprep.subr.mxu0 0.0
        %301 = vmatpush1.msra.mxu0 0.0
        %302 = vmatprep.subr.mxu0 0.0
        %303 = vmatpush1.msra.mxu0 0.0
        %304 = vmatprep.subr.mxu0 0.0
        %305 = vmatpush1.msra.mxu0 0.0
        %306 = vmatprep.subr.mxu0 0.0
        %307 = vmatpush1.msra.mxu0 0.0
        %308 = vmatprep.subr.mxu0 0.0
        %309 = vmatpush1.msra.mxu0 0.0
        %310 = vmatprep.subr.mxu0 0.0
        %311 = vmatpush1.msra.mxu0 0.0
        %312 = vmatprep.subr.mxu0 0.0
        %313 = vmatpush1.msra.mxu0 %v280
        %314 = vmatprep.subr.mxu0 0.0
        %315 = vmatpush1.msra.mxu0 %v279
        %316 = vmatprep.subr.mxu0 0.0
        %317 = vmatpush1.msra.mxu0 %v278
        %318 = vmatprep.subr.mxu0 0.0
        %319 = vmatpush1.msra.mxu0 %v277
        %320 = vmatprep.subr.mxu0 0.0
        %321 = vmatpush2.msra.mxu0 0.0
        %322 = vmatprep.subr.mxu0 0.0
        %323 = vmatpush2.msra.mxu0 0.0
        %324 = vmatprep.subr.mxu0 0.0
        %325 = vmatpush2.msra.mxu0 0.0
        %326 = vmatprep.subr.mxu0 0.0
        %327 = vmatpush2.msra.mxu0 0.0
        %328 = vmatprep.subr.mxu0 0.0
        %329 = vmatpush2.msra.mxu0 0.0
        %330 = vmatprep.subr.mxu0 0.0
        %331 = vmatpush2.msra.mxu0 0.0
        %332 = vmatprep.subr.mxu0 0.0
        %333 = vmatpush2.msra.mxu0 0.0
        %334 = vmatprep.subr.mxu0 0.0
        %335 = vmatpush2.msra.mxu0 0.0
        %336 = vmatprep.subr.mxu0 0.0
        %337 = vmatpush2.msra.mxu0 0.0
        %338 = vmatprep.subr.mxu0 0.0
        %339 = vmatpush2.msra.mxu0 0.0
        %340 = vmatprep.subr.mxu0 0.0
        %341 = vmatpush2.msra.mxu0 0.0
        %342 = vmatprep.subr.mxu0 0.0
        %343 = vmatpush2.msra.mxu0 0.0
        %344 = vmatprep.subr.mxu0 0.0
        %345 = vmatpush2.msra.mxu0 0.0
        %346 = vmatprep.subr.mxu0 0.0
        %347 = vmatpush2.msra.mxu0 0.0
        %348 = vmatprep.subr.mxu0 0.0
        %349 = vmatpush2.msra.mxu0 0.0
        %350 = vmatprep.subr.mxu0 0.0
        %351 = vmatpush2.msra.mxu0 0.0
        %352 = vmatprep.mubr.f32.mxu0 0.0
        %353 = vmatmul.mubr.f32.gmra.mxu0 %v283
        %v354 = vpop.f32.mrf.mxu0
        %v355 = vadd.f32 0.0, %v354
        %v356 = vpop.f32.mrf.mxu0
        %357 = vmatprep.mubr.f32.mxu0 0.0
        %358 = vmatmul.mubr.f32.gmra.mxu0 %v286
        %v359 = vpop.f32.mrf.mxu0
        %v360 = vadd.f32 0.0, %v359
        %v361 = vpop.f32.mrf.mxu0
        %362 = vdwg.mxu0
        %vm363 = vcmask 130048
        %364 = vst.msk [vmem:[%s256] sm:$0xff] %vm363, %v355
        %365 = vst.msk [vmem:[%s256 + $0x8] sm:$0xff] %vm363, %v360
        %368 = vrot.lane.b32.xlu0 %v355, 96
        %v369 = vpop.permute.xlu0 %368
        %370 = vrot.lane.b32.xlu0 %v360, 96
        %v371 = vpop.permute.xlu0 %370
        %374 = vst.msk [vmem:[%s263] sm:$0xff] %vm363, %v369
        %375 = vst.msk [vmem:[%s263 + $0x8] sm:$0xff] %vm363, %v371
        %376 = vrot.lane.b32.xlu0 %v355, 64
        %v377 = vpop.permute.xlu0 %376
        %378 = vrot.lane.b32.xlu0 %v360, 64
        %v379 = vpop.permute.xlu0 %378
        %382 = vst.msk [vmem:[%s270] sm:$0xff] %vm363, %v377
        %383 = vst.msk [vmem:[%s270 + $0x8] sm:$0xff] %vm363, %v379
        %384 = vrot.lane.b32.xlu0 %v355, 112
        %v385 = vpop.permute.xlu0 %384
        %386 = vrot.lane.b32.xlu0 %v360, 112
        %v387 = vpop.permute.xlu0 %386
        %s390 = scalar_lea.vmem %s256, 16 [#allocation7]
        %391 = vst.msk [vmem:[%s390] sm:$0xff] %vm363, %v385
        %392 = vst.msk [vmem:[%s390 + $0x8] sm:$0xff] %vm363, %v387
        %393 = vrot.lane.b32.xlu0 %v355, 80
        %v394 = vpop.permute.xlu0 %393
        %395 = vrot.lane.b32.xlu0 %v360, 80
        %v396 = vpop.permute.xlu0 %395
        %s399 = scalar_lea.vmem %s263, 16 [#allocation8]
        %400 = vst.msk [vmem:[%s399] sm:$0xff] %vm363, %v394
        %401 = vst.msk [vmem:[%s399 + $0x8] sm:$0xff] %vm363, %v396
        %402 = vrot.lane.b32.xlu0 %v355, 48
        %v403 = vpop.permute.xlu0 %402
        %404 = vrot.lane.b32.xlu0 %v360, 48
        %v405 = vpop.permute.xlu0 %404
        %s408 = scalar_lea.vmem %s270, 16 [#allocation10]
        %409 = vst.msk [vmem:[%s408] sm:$0xff] %vm363, %v403
        %410 = vst.msk [vmem:[%s408 + $0x8] sm:$0xff] %vm363, %v405
        %s411 = sand.u32 %s97, 1
        %s412 = scalar_lea.sflag [#allocation4], %s411
        %s413 = sand.u32 %s97, 1
        %s414 = smul.addr %s413, 32
        %s415 = scalar_lea.vmem [#allocation7], %s414
        %s416 = sand.u32 %s26, 1
        %s417 = scalar_lea.sflag [#allocation9], %s416
        %s418 = sand.u32 %s125, 1
        %s419 = smul.addr %s418, 32
        %s420 = scalar_lea.vmem [#allocation8], %s419
        %s421 = sand.u32 %s26, 1
        %s422 = scalar_lea.sflag [#allocation9], %s421
        %s423 = sand.u32 %s153, 1
        %s424 = smul.addr %s423, 32
        %s425 = scalar_lea.vmem [#allocation10], %s424
        // Predicated region
        $region37: #{tpu_custom_call.1} parent=27 // pred_check
          %p426 = pneg %p107
        $region38: #{tpu_custom_call.1} parent=27 // pred_check_branch
          %428 = sbr.rel (%p426) target = $region40
        $region39: #{tpu_custom_call.1} parent=27 // pred_region
          %s429 = smul.u32 2, %s31
          %s431 = ssub.s32 512, 512
          %432 = vsyncadd %s412, %s431
          %s433 = smul.addr %s30, 4
          %s434 = sadd.s32 %s429, %s433
          %s435 = smul.addr %s434, 128
          %s436 = scalar_lea.hbm %s2, %s435
          %s437 = sshll.u32 %s415, 4
          %s438 = int_to_ptr.vmem [resolvable:$true] %s437
          %443 = dma.vmem_to_hbm [thread:$0]  %s438, 512, %s436, %s412, 128, 128, 8
        $region40: #{tpu_custom_call.1} parent=27 // pred_fallthru
          _
        // Predicated region
        $region41: #{tpu_custom_call.1} parent=27 // pred_check
          %p444 = pneg %p135
        $region42: #{tpu_custom_call.1} parent=27 // pred_check_branch
          %446 = sbr.rel (%p444) target = $region44
        $region43: #{tpu_custom_call.1} parent=27 // pred_region
          %s447 = smul.u32 2, %s31
          %s449 = ssub.s32 512, 512
          %450 = vsyncadd %s417, %s449
          %s451 = smul.addr %s30, 4
          %s452 = sadd.s32 %s447, %s451
          %s453 = smul.addr %s452, 128
          %s454 = scalar_lea.hbm %s3, %s453
          %s455 = sshll.u32 %s420, 4
          %s456 = int_to_ptr.vmem [resolvable:$true] %s455
          %461 = dma.vmem_to_hbm [thread:$0]  %s456, 512, %s454, %s417, 128, 128, 8
        $region44: #{tpu_custom_call.1} parent=27 // pred_fallthru
          _
        // Predicated region
        $region45: #{tpu_custom_call.1} parent=27 // pred_check
          %p462 = pneg %p163
        $region46: #{tpu_custom_call.1} parent=27 // pred_check_branch
          %464 = sbr.rel (%p462) target = $region48
        $region47: #{tpu_custom_call.1} parent=27 // pred_region
          %s465 = smul.u32 2, %s31
          %s467 = ssub.s32 512, 512
          %468 = vsyncadd %s422, %s467
          %s469 = smul.addr %s30, 4
          %s470 = sadd.s32 %s465, %s469
          %s471 = smul.addr %s470, 128
          %s472 = scalar_lea.hbm %s4, %s471
          %s473 = sshll.u32 %s425, 4
          %s474 = int_to_ptr.vmem [resolvable:$true] %s473
          %479 = dma.vmem_to_hbm [thread:$0]  %s474, 512, %s472, %s422, 128, 128, 8
        $region48: #{tpu_custom_call.1} parent=27 // pred_fallthru
          _
      $region28: #{tpu_custom_call.1} parent=5 // pred_fallthru
        _
      %p480 = scmp.le.s32.totalorder 2, %s21
      // Predicated region
      $region49: #{tpu_custom_call.1} parent=5 // pred_check
        %p481 = pneg %p480
      $region50: #{tpu_custom_call.1} parent=5 // pred_check_branch
        %483 = sbr.rel (%p481) target = $region52
      $region51: #{tpu_custom_call.1} parent=5 // pred_region
        %s484 = ssub.s32 %s21, 2
        // Predicated region
        $region53: #{tpu_custom_call.1} parent=51 // pred_check
          %p485 = pneg %p113
        $region54: #{tpu_custom_call.1} parent=51 // pred_check_branch
          %487 = sbr.rel (%p485) target = $region56
        $region55: #{tpu_custom_call.1} parent=51 // pred_region
          %s488 = sand.u32 %s98, 1
          %s489 = scalar_lea.sflag [#allocation4], %s488
          %s490 = sand.u32 %s98, 1
          %s491 = smul.addr %s490, 32
          %s492 = scalar_lea.vmem [#allocation7], %s491
          %493 = dma.done %s489, 512
        $region56: #{tpu_custom_call.1} parent=51 // pred_fallthru
          _
        // Predicated region
        $region57: #{tpu_custom_call.1} parent=51 // pred_check
          %p494 = pneg %p141
        $region58: #{tpu_custom_call.1} parent=51 // pred_check_branch
          %496 = sbr.rel (%p494) target = $region60
        $region59: #{tpu_custom_call.1} parent=51 // pred_region
          %s497 = sand.u32 %s27, 1
          %s498 = scalar_lea.sflag [#allocation9], %s497
          %s499 = sand.u32 %s126, 1
          %s500 = smul.addr %s499, 32
          %s501 = scalar_lea.vmem [#allocation8], %s500
          %502 = dma.done %s498, 512
        $region60: #{tpu_custom_call.1} parent=51 // pred_fallthru
          _
        // Predicated region
        $region61: #{tpu_custom_call.1} parent=51 // pred_check
          %p503 = pneg %p169
        $region62: #{tpu_custom_call.1} parent=51 // pred_check_branch
          %505 = sbr.rel (%p503) target = $region64
        $region63: #{tpu_custom_call.1} parent=51 // pred_region
          %s506 = sand.u32 %s27, 1
          %s507 = scalar_lea.sflag [#allocation9], %s506
          %s508 = sand.u32 %s154, 1
          %s509 = smul.addr %s508, 32
          %s510 = scalar_lea.vmem [#allocation10], %s509
          %511 = dma.done %s507, 512
        $region64: #{tpu_custom_call.1} parent=51 // pred_fallthru
          _
      $region52: #{tpu_custom_call.1} parent=5 // pred_fallthru
        _
    $region6: #{tpu_custom_call.1} parent=1 // loop_footer
      %s25 = sadd.s32 1, %s21
    $region7: #{tpu_custom_call.1} parent=1 // loop_footer_branch
      %20 = sbr.rel target = $region3
    $region8: #{tpu_custom_call.1} parent=1 // loop_exit
      _
    %512 = vsyncpa [#allocation3], 1
    %s513 = scalar_lea.sflag [#allocation3], 1
    %514 = vsyncpa %s513, 1
    %515 = vsyncpa [#allocation6], 1
    %516 = vsyncpa [#allocation4], 1
    %s517 = scalar_lea.sflag [#allocation4], 1
    %518 = vsyncpa %s517, 1
    %519 = vsyncpa [#allocation9], 1
    %s520 = scalar_lea.sflag [#allocation9], 1
    %521 = vsyncpa %s520, 1

</llo_original>
